<compile_context>
chip_gen: v6e
topology: v6e:2x2x1
jax: 0.10.0
libtpu: 0.0.40
codegen_flags: <defaults>
</compile_context>

<pallas_src>
import functools
import math

import jax
import jax.numpy as jnp
from jax.experimental import pallas as pl
from jax.experimental.pallas import tpu as pltpu

# ----------------------------------------------------------------------------
# Config
# ----------------------------------------------------------------------------
BN_EPS = 1e-5
COMPUTE_DTYPE = jnp.bfloat16      # MXU input dtype (accumulation stays f32)
STORE_DTYPE = jnp.bfloat16        # activation storage dtype between layers
TK_MAX = 2304                     # K tile (multiple of 128; divides all real K here)


def _rup(x, m):
    return ((x + m - 1) // m) * m


def _select_budget():
    """Chip-adaptive tiling: bigger tiles / VMEM budget on v5e/v6e (128 MiB
    physical VMEM), conservative on v7x (64 MiB physical VMEM)."""
    vmem_phys = 64 * 1024 * 1024          # conservative default
    try:
        vmem_phys = int(pltpu.get_tpu_info().vmem_capacity_bytes)
    except Exception:
        pass
    if vmem_phys >= 100 * 1024 * 1024:    # v5e / v6e / v5p
        return 2048, 96 * 1024 * 1024
    return 1024, 48 * 1024 * 1024         # v7x


TM_MAX, VMEM_LIMIT = _select_budget()


# ----------------------------------------------------------------------------
# Pallas kernels
# ----------------------------------------------------------------------------
def _conv_accum_kernel(x_ref, w_ref, y_ref, stats_ref, acc_ref):
    """Grid (mi, kk).  acc (f32 VMEM scratch) += x_tile @ w[kk].  The whole
    weight (nk, tk, Coutp) is VMEM-resident (constant block index -> single
    fetch).  On the last K step: cast the accumulator to bf16 into y and emit
    a full (8, Coutp) stats block (row0=sum, row1=sum-of-squares, rows 2..7=0)
    for the two-pass batch BatchNorm."""
    k = pl.program_id(1)

    @pl.when(k == 0)
    def _init():
        acc_ref[...] = jnp.zeros_like(acc_ref)

    acc_ref[...] += jnp.dot(x_ref[...], w_ref[k],
                            preferred_element_type=jnp.float32)

    @pl.when(k == pl.num_programs(1) - 1)
    def _finish():
        y = acc_ref[...]
        y_ref[...] = y.astype(y_ref.dtype)
        s1 = jnp.sum(y, axis=0, keepdims=True)
        s2 = jnp.sum(y * y, axis=0, keepdims=True)
        stats_ref[...] = jnp.concatenate(
            [s1, s2, jnp.zeros((6,) + s1.shape[1:], jnp.float32)], axis=0)


def _bn_act_kernel(y_ref, sc_ref, sh_ref, o_ref, *, relu):
    v = y_ref[...].astype(jnp.float32) * sc_ref[...] + sh_ref[...]
    if relu:
        v = jnp.maximum(v, 0.0)
    o_ref[...] = v.astype(o_ref.dtype)


def _bn_act_res_kernel(y_ref, sc_ref, sh_ref, r_ref, o_ref, *, relu):
    v = (y_ref[...].astype(jnp.float32) * sc_ref[...] + sh_ref[...]
         + r_ref[...].astype(jnp.float32))
    if relu:
        v = jnp.maximum(v, 0.0)
    o_ref[...] = v.astype(o_ref.dtype)


def _bn4_sum_kernel(y0_ref, y1_ref, y2_ref, y3_ref, sc_ref, sh_ref, o_ref):
    """Fused ASPP epilogue: per-branch BN + ReLU, then 4-way sum (f32 out)."""
    total = jnp.zeros(o_ref.shape, jnp.float32)
    for b, y_ref in enumerate((y0_ref, y1_ref, y2_ref, y3_ref)):
        v = (y_ref[...].astype(jnp.float32) * sc_ref[b:b + 1, :]
             + sh_ref[b:b + 1, :])
        total = total + jnp.maximum(v, 0.0)
    o_ref[...] = total


def _maxpool_kernel(x_ref, o_ref):
    """x_ref: (9, TM, C) window taps (padded with -inf); running max over taps."""
    m = x_ref[0]
    for t in range(1, 9):
        m = jnp.maximum(m, x_ref[t])
    o_ref[...] = m.astype(o_ref.dtype)


# ----------------------------------------------------------------------------
# Conv + BN (+residual) (+ReLU)
# ----------------------------------------------------------------------------
def _im2col(x, kh, kw, stride, padding, dilation):
    """x: NHWC -> patches [N*Ho*Wo, C*kh*kw] ordered (c, ki, kj)."""
    N, H, W, C = x.shape
    Ho = (H + 2 * padding - dilation * (kh - 1) - 1) // stride + 1
    Wo = (W + 2 * padding - dilation * (kw - 1) - 1) // stride + 1
    xp = jnp.pad(x, ((0, 0), (padding, padding), (padding, padding), (0, 0)))
    taps = []
    for i in range(kh):
        for j in range(kw):
            i0, j0 = i * dilation, j * dilation
            sl = xp[:, i0:i0 + (Ho - 1) * stride + 1:stride,
                       j0:j0 + (Wo - 1) * stride + 1:stride, :]
            taps.append(sl)                      # [N,Ho,Wo,C]
    t = jnp.stack(taps, axis=3)                  # [N,Ho,Wo,kh*kw,C]
    t = jnp.transpose(t, (0, 1, 2, 4, 3))        # [N,Ho,Wo,C,kh*kw]
    return t.reshape(N * Ho * Wo, C * kh * kw), (N, Ho, Wo)


def _weight_matrix(w, cin_pad, coutp, kp, tk):
    """(Cout, Cin, kh, kw) -> bf16 (kp//tk, tk, coutp) matching the (c, ki, kj)
    patch column order; zero-padded input channels / output channels / K rows."""
    Cout, Cin, kh, kw = w.shape
    if cin_pad > Cin:
        w = jnp.pad(w, ((0, 0), (0, cin_pad - Cin), (0, 0), (0, 0)))
    K = cin_pad * kh * kw
    wm = w.reshape(Cout, K).T
    wm = jnp.pad(wm, ((0, kp - K), (0, coutp - Cout)))
    return wm.astype(COMPUTE_DTYPE).reshape(kp // tk, tk, coutp)


def _tile_m(M):
    if M <= 16:
        return 16
    # prefer >=2 row tiles so both v7x TensorCores get work on small maps
    return min(TM_MAX, _rup((M + 1) // 2, 16))


def _conv_pass1(x, w, *, stride=1, padding=0, dilation=1):
    """Conv2d(bias=False) as a tiled MXU matmul.  Returns the bf16 pre-BN
    activation y (Mp, Coutp), BN scale/shift (1, Coutp) computed from exact
    batch statistics, and layout metadata (M, Mp, tm, N, Ho, Wo, Coutp)."""
    Cout, Cin, kh, kw = w.shape
    Cx = x.shape[-1]
    assert Cx >= Cin
    x = x.astype(COMPUTE_DTYPE)

    if kh == 1 and kw == 1:
        assert padding == 0
        xs = x[:, ::stride, ::stride, :] if stride > 1 else x
        N, Ho, Wo, _ = xs.shape
        patches = xs.reshape(N * Ho * Wo, Cx)          # no im2col needed
    else:
        # TODO(synk): gather the kh*kw taps inside the kernel (Element-offset
        # index_map / manual DMA) instead of materializing im2col in HBM.
        patches, (N, Ho, Wo) = _im2col(x, kh, kw, stride, padding, dilation)

    M, K = patches.shape
    Coutp = _rup(Cout, 128)
    tk = min(TK_MAX, _rup(K, 128))
    Kp = _rup(K, tk)
    nk = Kp // tk
    tm = _tile_m(M)
    Mp = _rup(M, tm)
    nm = Mp // tm

    patches = jnp.pad(patches, ((0, Mp - M), (0, Kp - K)))
    wm = _weight_matrix(w, Cx, Coutp, Kp, tk)           # (nk, tk, Coutp) bf16

    y, pstats = pl.pallas_call(
        _conv_accum_kernel,
        out_shape=(jax.ShapeDtypeStruct((Mp, Coutp), STORE_DTYPE),
                   jax.ShapeDtypeStruct((nm * 8, Coutp), jnp.float32)),
        grid_spec=pltpu.PrefetchScalarGridSpec(
            num_scalar_prefetch=0,
            grid=(nm, nk),
            in_specs=[
                pl.BlockSpec((tm, tk), lambda i, k: (i, k)),
                # whole weight VMEM-resident: constant block index -> 1 fetch
                pl.BlockSpec((nk, tk, Coutp), lambda i, k: (0, 0, 0)),
            ],
            out_specs=[
                pl.BlockSpec((tm, Coutp), lambda i, k: (i, 0)),
                pl.BlockSpec((8, Coutp), lambda i, k: (i, 0)),
            ],
            scratch_shapes=[pltpu.VMEM((tm, Coutp), jnp.float32)],
        ),
        compiler_params=pltpu.CompilerParams(
            dimension_semantics=("parallel", "arbitrary"),
            vmem_limit_bytes=VMEM_LIMIT,
        ),
    )(patches, wm)

    # Exact batch statistics: zero-padded rows/channels contribute 0; divide
    # by the true M.  NOTE: E[x^2]-mean^2 in f32 (clamped) is adequate here
    # given bf16 activations.
    pstats = pstats.reshape(nm, 8, Coutp)
    ch_sum = jnp.sum(pstats[:, 0, :], axis=0)
    ch_sqs = jnp.sum(pstats[:, 1, :], axis=0)
    mean = ch_sum / M
    var = jnp.maximum(ch_sqs / M - mean * mean, 0.0)    # biased (training mode)
    scale = jax.lax.rsqrt(var + BN_EPS).reshape(1, Coutp)
    shift = (-mean).reshape(1, Coutp) * scale
    return y, scale, shift, (M, Mp, tm, N, Ho, Wo, Coutp)


def _bn_apply(y, scale, shift, residual, relu, meta):
    """Pass 2: normalize (+residual) (+ReLU) the bf16 intermediate y."""
    M, Mp, tm, N, Ho, Wo, Coutp = meta
    nm = Mp // tm
    tn = min(512, Coutp)
    nn = Coutp // tn
    y_spec = pl.BlockSpec((tm, tn), lambda i, j: (i, j))
    ss_spec = pl.BlockSpec((1, tn), lambda i, j: (0, j))
    if residual is None:
        kernel = functools.partial(_bn_act_kernel, relu=relu)
        in_specs = [y_spec, ss_spec, ss_spec]
        args = (y, scale, shift)
    else:
        res = residual.astype(STORE_DTYPE).reshape(M, Coutp)
        res = jnp.pad(res, ((0, Mp - M), (0, 0)))
        kernel = functools.partial(_bn_act_res_kernel, relu=relu)
        in_specs = [y_spec, ss_spec, ss_spec, y_spec]
        args = (y, scale, shift, res)

    return pl.pallas_call(
        kernel,
        out_shape=jax.ShapeDtypeStruct((Mp, Coutp), STORE_DTYPE),
        grid_spec=pltpu.PrefetchScalarGridSpec(
            num_scalar_prefetch=0,
            grid=(nm, nn),
            in_specs=in_specs,
            out_specs=pl.BlockSpec((tm, tn), lambda i, j: (i, j)),
        ),
        compiler_params=pltpu.CompilerParams(
            dimension_semantics=("parallel", "parallel"),
            vmem_limit_bytes=VMEM_LIMIT,
        ),
    )(*args)


def conv_bn(x, w, *, stride=1, padding=0, dilation=1, relu=True, residual=None):
    """Conv2d(bias=False) + BatchNorm2d(train, gamma=1, beta=0) [+res] [+ReLU].
    x: NHWC (channels may already be 128-padded with zeros).  Returns NHWC with
    Cout padded to a multiple of 128 (padded channels are exactly 0)."""
    y, scale, shift, meta = _conv_pass1(x, w, stride=stride, padding=padding,
                                        dilation=dilation)
    M, Mp, tm, N, Ho, Wo, Coutp = meta
    out = _bn_apply(y, scale, shift, residual, relu, meta)
    return out[:M].reshape(N, Ho, Wo, Coutp)


# ----------------------------------------------------------------------------
# ASPP head: 4 atrous branches + fused BN/ReLU/sum epilogue
# ----------------------------------------------------------------------------
def aspp_sum(x, ws, rates):
    """Four atrous-conv branches (pass 1 each) followed by ONE fused kernel
    applying the 4 per-branch BatchNorms + ReLUs and the 4-way sum."""
    ys, scs, shs = [], [], []
    meta = None
    for w, r in zip(ws, rates):
        if r == 1:
            y, sc, sh, meta = _conv_pass1(x, w, stride=1, padding=0, dilation=1)
        else:
            y, sc, sh, meta = _conv_pass1(x, w, stride=1, padding=r, dilation=r)
        ys.append(y)
        scs.append(sc)
        shs.append(sh)

    M, Mp, tm, N, Ho, Wo, Coutp = meta          # identical across branches
    nm = Mp // tm
    scale = jnp.concatenate(scs, axis=0)        # (4, Coutp)
    shift = jnp.concatenate(shs, axis=0)        # (4, Coutp)

    y_spec = pl.BlockSpec((tm, Coutp), lambda i: (i, 0))
    ss_spec = pl.BlockSpec((4, Coutp), lambda i: (0, 0))
    out = pl.pallas_call(
        _bn4_sum_kernel,
        out_shape=jax.ShapeDtypeStruct((Mp, Coutp), jnp.float32),
        grid_spec=pltpu.PrefetchScalarGridSpec(
            num_scalar_prefetch=0,
            grid=(nm,),
            in_specs=[y_spec] * 4 + [ss_spec, ss_spec],
            out_specs=pl.BlockSpec((tm, Coutp), lambda i: (i, 0)),
        ),
        compiler_params=pltpu.CompilerParams(
            dimension_semantics=("parallel",),
            vmem_limit_bytes=VMEM_LIMIT,
        ),
    )(*ys, scale, shift)
    return out[:M].reshape(N, Ho, Wo, Coutp)


# ----------------------------------------------------------------------------
# MaxPool
# ----------------------------------------------------------------------------
def maxpool_3x3_s2_ceil(x):
    """nn.MaxPool2d(kernel_size=3, stride=2, padding=1, ceil_mode=True), NHWC."""
    N, H, W, C = x.shape
    k, s, p = 3, 2, 1

    def odim(L):
        o = -(-(L + 2 * p - k) // s) + 1            # ceil
        if (o - 1) * s >= L + p:                    # last window must start in-bounds
            o -= 1
        return o

    Ho, Wo = odim(H), odim(W)
    Hp, Wp = (Ho - 1) * s + k, (Wo - 1) * s + k
    xp = jnp.full((N, Hp, Wp, C), -jnp.inf, x.dtype)
    xp = xp.at[:, p:p + H, p:p + W, :].set(x)
    # TODO(synk): gather the 9 pooling taps in-kernel instead of stacking in HBM.
    taps = []
    for i in range(k):
        for j in range(k):
            sl = xp[:, i:i + (Ho - 1) * s + 1:s, j:j + (Wo - 1) * s + 1:s, :]
            taps.append(sl.reshape(N * Ho * Wo, C))
    M = N * Ho * Wo
    tm = min(512, _rup(M, 16))
    Mp = _rup(M, tm)
    stacked = jnp.stack(taps, axis=0)                        # (9, M, C)
    stacked = jnp.pad(stacked, ((0, 0), (0, Mp - M), (0, 0)))
    out = pl.pallas_call(
        _maxpool_kernel,
        out_shape=jax.ShapeDtypeStruct((Mp, C), x.dtype),
        grid_spec=pltpu.PrefetchScalarGridSpec(
            num_scalar_prefetch=0,
            grid=(Mp // tm,),
            in_specs=[pl.BlockSpec((9, tm, C), lambda i: (0, i, 0))],
            out_specs=pl.BlockSpec((tm, C), lambda i: (i, 0)),
        ),
        compiler_params=pltpu.CompilerParams(
            dimension_semantics=("parallel",),
            vmem_limit_bytes=VMEM_LIMIT,
        ),
    )(stacked)
    return out[:M].reshape(N, Ho, Wo, C)


# ----------------------------------------------------------------------------
# Parameter init (kaiming_normal_ conv weights; BN params are constant 1/0)
# ----------------------------------------------------------------------------
def _kaiming(key, cout, cin, kh, kw):
    fan_in = cin * kh * kw
    std = math.sqrt(2.0 / fan_in)
    return jax.random.normal(key, (cout, cin, kh, kw), jnp.float32) * std


def init_params(key, in_channels, n_class, layers, pyramids):
    keys = iter(jax.random.split(key, 256))
    params = {"conv1_w": _kaiming(next(keys), 64, in_channels, 7, 7)}
    inplanes = 64

    def make_layer(planes, blocks, stride, rate):
        nonlocal inplanes
        blist = []
        for i in range(blocks):
            s = stride if i == 0 else 1
            r = rate if i == 0 else 1
            has_down = (i == 0) and (stride != 1 or inplanes != planes * 4)
            blk = {
                "w1": _kaiming(next(keys), planes, inplanes, 1, 1),
                "w2": _kaiming(next(keys), planes, planes, 3, 3),
                "w3": _kaiming(next(keys), planes * 4, planes, 1, 1),
                "stride": s,
                "rate": r,
            }
            if has_down:
                blk["wd"] = _kaiming(next(keys), planes * 4, inplanes, 1, 1)
            blist.append(blk)
            inplanes = planes * 4
        return blist

    params["layer1"] = make_layer(64, layers[0], 1, 1)
    params["layer2"] = make_layer(128, layers[1], 2, 1)
    params["layer3"] = make_layer(256, layers[2], 1, 2)
    params["layer4"] = make_layer(512, layers[3], 1, 4)
    for idx, rate in enumerate(pyramids):
        ks = 1 if rate == 1 else 3
        params[f"aspp{idx+1}_first"] = _kaiming(next(keys), n_class, 1024, ks, ks)
        params[f"aspp{idx+1}_second"] = _kaiming(next(keys), n_class, 2048, ks, ks)
    params["pyramids"] = pyramids
    params["n_class"] = n_class
    return params


# ----------------------------------------------------------------------------
# Forward pass
# ----------------------------------------------------------------------------
def _bottleneck(x, blk):
    s, r = blk["stride"], blk["rate"]
    out = conv_bn(x, blk["w1"], stride=1, padding=0, dilation=1, relu=True)
    out = conv_bn(out, blk["w2"], stride=s, padding=r, dilation=r, relu=True)
    if "wd" in blk:
        identity = conv_bn(x, blk["wd"], stride=s, padding=0, dilation=1, relu=False)
    else:
        identity = x
    # conv3 + bn3 + residual add + relu (residual/ReLU fused in the BN-apply pass)
    return conv_bn(out, blk["w3"], stride=1, padding=0, dilation=1,
                   relu=True, residual=identity)


def deeplabv2_forward(params, x_nchw):
    pyramids = params["pyramids"]
    n_class = params["n_class"]
    x = jnp.transpose(x_nchw.astype(jnp.float32), (0, 2, 3, 1))   # NCHW -> NHWC
    x = conv_bn(x, params["conv1_w"], stride=2, padding=3, relu=True)  # C padded to 128
    x = maxpool_3x3_s2_ceil(x)
    for blk in params["layer1"]:
        x = _bottleneck(x, blk)
    for blk in params["layer2"]:
        x = _bottleneck(x, blk)
    x_first = x
    for blk in params["layer3"]:
        x_first = _bottleneck(x_first, blk)
    x_second = x_first
    for blk in params["layer4"]:
        x_second = _bottleneck(x_second, blk)

    ws_first = [params[f"aspp{i+1}_first"] for i in range(4)]
    ws_second = [params[f"aspp{i+1}_second"] for i in range(4)]
    out_first = aspp_sum(x_first, ws_first, pyramids)[..., :n_class]
    out_second = aspp_sum(x_second, ws_second, pyramids)[..., :n_class]

    # back to NCHW to match the PyTorch module's output convention
    return (jnp.transpose(out_first, (0, 3, 1, 2)).astype(jnp.float32),
            jnp.transpose(out_second, (0, 3, 1, 2)).astype(jnp.float32))


# ----------------------------------------------------------------------------
if __name__ == "__main__":
    key = jax.random.PRNGKey(0)
    kp, kx = jax.random.split(key)

    in_channels = 3
    n_class = 8
    layers = [1, 1, 1, 1]          # small Bottleneck counts to keep it quick
    pyramids = [6, 12, 18, 24]     # standard DeepLabV2 ASPP rates

    params = init_params(kp, in_channels, n_class, layers, pyramids)
    x = jax.random.normal(kx, (2, in_channels, 16, 16), jnp.float32)   # NCHW

    out_first, out_second = deeplabv2_forward(params, x)
    jax.block_until_ready((out_first, out_second))

    assert out_first.shape == (2, n_class, 3, 3), out_first.shape
    assert out_second.shape == (2, n_class, 3, 3), out_second.shape
    assert jnp.all(jnp.isfinite(out_first)) and jnp.all(jnp.isfinite(out_second))
    print("KERNEL_OK")
</pallas_src>

<mosaic_0001>
module attributes {stable_mosaic.version = 11 : i64} {
  func.func @_conv_accum_kernel(%arg0: i32, %arg1: i32, %arg2: memref<64x256xbf16, #tpu.memory_space<vmem>>, %arg3: memref<1x256x128xbf16, #tpu.memory_space<vmem>>, %arg4: memref<64x128xbf16, #tpu.memory_space<vmem>>, %arg5: memref<8x128xf32, #tpu.memory_space<vmem>>, %arg6: memref<64x128xf32, #tpu.memory_space<vmem>>) attributes {dimension_semantics = [#tpu.dimension_semantics<parallel>, #tpu.dimension_semantics<arbitrary>], iteration_bounds = array<i64: 2, 1>, scalar_prefetch = 0 : i64, scratch_operands = 1 : i64, tpu.core_type = #tpu.core_type<tc>, window_params = [{transform_indices = @transform_0, window_bounds = array<i64: 64, 256>}, {pipeline_mode = #tpu.pipeline_mode<synchronous>, transform_indices = @transform_1, window_bounds = array<i64: 1, 256, 128>}, {transform_indices = @transform_2, window_bounds = array<i64: 64, 128>}, {transform_indices = @transform_3, window_bounds = array<i64: 8, 128>}]} {
    %c0_i32 = arith.constant 0 : i32
    %0 = arith.cmpi eq, %arg1, %c0_i32 : i32
    %1 = arith.extui %0 : i1 to i32
    %c0_i32_0 = arith.constant 0 : i32
    %2 = arith.cmpi ne, %1, %c0_i32_0 : i32
    scf.if %2 {
      %cst_10 = arith.constant 0.000000e+00 : f32
      %14 = vector.broadcast %cst_10 : f32 to vector<64x128xf32>
      %c0_11 = arith.constant 0 : index
      %c0_12 = arith.constant 0 : index
      %15 = vector.load %arg6[%c0_11, %c0_12] : memref<64x128xf32, #tpu.memory_space<vmem>>, vector<64x128xf32>
      tpu.vector_store %arg6[%c0_11, %c0_12], %14 {strides = array<i32>} : memref<64x128xf32, #tpu.memory_space<vmem>>, vector<64x128xf32>,
    } else {
    }
    %c0 = arith.constant 0 : index
    %c0_1 = arith.constant 0 : index
    %3 = vector.load %arg6[%c0, %c0_1] : memref<64x128xf32, #tpu.memory_space<vmem>>, vector<64x128xf32>
    %c0_2 = arith.constant 0 : index
    %c0_3 = arith.constant 0 : index
    %4 = vector.load %arg2[%c0_2, %c0_3] : memref<64x256xbf16, #tpu.memory_space<vmem>>, vector<64x256xbf16>
    %5 = arith.index_cast %arg1 : i32 to index
    %c0_4 = arith.constant 0 : index
    %c0_5 = arith.constant 0 : index
    %6 = vector.load %arg3[%5, %c0_4, %c0_5] : memref<1x256x128xbf16, #tpu.memory_space<vmem>>, vector<1x256x128xbf16>
    %7 = vector.shape_cast %6 : vector<1x256x128xbf16> to vector<256x128xbf16>
    %cst = arith.constant dense<0.000000e+00> : vector<64x128xf32>
    %8 = tpu.matmul %4, %7, %cst {dimension_numbers = #tpu.dot_dimension_numbers<[1], [0], [0], [1], [0, 0, 1, 1], [], []>} : vector<64x256xbf16>, vector<256x128xbf16>, vector<64x128xf32> -> vector<64x128xf32>
    %9 = arith.addf %3, %8 : vector<64x128xf32>
    %c0_6 = arith.constant 0 : index
    %c0_7 = arith.constant 0 : index
    %10 = vector.load %arg6[%c0_6, %c0_7] : memref<64x128xf32, #tpu.memory_space<vmem>>, vector<64x128xf32>
    tpu.vector_store %arg6[%c0_6, %c0_7], %9 {strides = array<i32>} : memref<64x128xf32, #tpu.memory_space<vmem>>, vector<64x128xf32>,
    %c0_i32_8 = arith.constant 0 : i32
    %11 = arith.cmpi eq, %arg1, %c0_i32_8 : i32
    %12 = arith.extui %11 : i1 to i32
    %c0_i32_9 = arith.constant 0 : i32
    %13 = arith.cmpi ne, %12, %c0_i32_9 : i32
    scf.if %13 {
      %c0_10 = arith.constant 0 : index
      %c0_11 = arith.constant 0 : index
      %14 = vector.load %arg6[%c0_10, %c0_11] : memref<64x128xf32, #tpu.memory_space<vmem>>, vector<64x128xf32>
      %15 = arith.truncf %14 : vector<64x128xf32> to vector<64x128xbf16>
      %c0_12 = arith.constant 0 : index
      %c0_13 = arith.constant 0 : index
      %16 = vector.load %arg4[%c0_12, %c0_13] : memref<64x128xbf16, #tpu.memory_space<vmem>>, vector<64x128xbf16>
      tpu.vector_store %arg4[%c0_12, %c0_13], %15 {strides = array<i32>} : memref<64x128xbf16, #tpu.memory_space<vmem>>, vector<64x128xbf16>,
      %cst_14 = arith.constant dense<0.000000e+00> : vector<128xf32>
      %17 = vector.multi_reduction <add>, %14, %cst_14 [0] : vector<64x128xf32> to vector<128xf32>
      %18 = vector.shape_cast %17 : vector<128xf32> to vector<1x128xf32>
      %19 = arith.mulf %14, %14 : vector<64x128xf32>
      %cst_15 = arith.constant dense<0.000000e+00> : vector<128xf32>
      %20 = vector.multi_reduction <add>, %19, %cst_15 [0] : vector<64x128xf32> to vector<128xf32>
      %21 = vector.shape_cast %20 : vector<128xf32> to vector<1x128xf32>
      %cst_16 = arith.constant 0.000000e+00 : f32
      %22 = vector.broadcast %cst_16 : f32 to vector<6x128xf32>
      %23 = tpu.concatenate %18, %21, %22 in 0 : vector<1x128xf32>, vector<1x128xf32>, vector<6x128xf32> -> vector<8x128xf32>
      %c0_17 = arith.constant 0 : index
      %c0_18 = arith.constant 0 : index
      %24 = vector.load %arg5[%c0_17, %c0_18] : memref<8x128xf32, #tpu.memory_space<vmem>>, vector<8x128xf32>
      tpu.vector_store %arg5[%c0_17, %c0_18], %23 {strides = array<i32>} : memref<8x128xf32, #tpu.memory_space<vmem>>, vector<8x128xf32>,
    } else {
    }
    return
  }
  func.func @transform_0(%arg0: i32, %arg1: i32) -> (i32, i32) {
    %c0_i32 = arith.constant 0 : i32
    return %arg0, %arg1 : i32, i32
  }
  func.func @transform_1(%arg0: i32, %arg1: i32) -> (i32, i32, i32) {
    %c0_i32 = arith.constant 0 : i32
    %c0_i32_0 = arith.constant 0 : i32
    %c0_i32_1 = arith.constant 0 : i32
    %c0_i32_2 = arith.constant 0 : i32
    return %c0_i32, %c0_i32_0, %c0_i32_1 : i32, i32, i32
  }
  func.func @transform_2(%arg0: i32, %arg1: i32) -> (i32, i32) {
    %c0_i32 = arith.constant 0 : i32
    %c0_i32_0 = arith.constant 0 : i32
    return %arg0, %c0_i32 : i32, i32
  }
  func.func @transform_3(%arg0: i32, %arg1: i32) -> (i32, i32) {
    %c0_i32 = arith.constant 0 : i32
    %c0_i32_0 = arith.constant 0 : i32
    return %arg0, %c0_i32 : i32, i32
  }
}

</mosaic_0001>

<llo_original>
// kernel: tpu_custom_call.1
$region0: #{tpu_custom_call.1}
  #allocation0 [shape = 'u32[]', space=smem, size = 0x4, offset = 0x4, fixed_abs, tag = 'smem constant byte address 0x4 - core index']
  #allocation1 [shape = 'u32[144,128]{1,0:T(1,128)}', space=vmem, size = 0x12000, scoped, tag = 'internal scratch']
  #allocation2 [shape = 'f32[64,128]{1,0:T(8,128)}', space=vmem, size = 0x8000, scoped, tag = 'scratch operand']
  %s0 = inlined_call_operand.hbm [shape: bf16[128,256], index: 0, kind: input, shape index: {}]
  %s1 = inlined_call_operand.hbm [shape: bf16[1,256,128], index: 1, kind: input, shape index: {}]
  %s2 = inlined_call_operand.hbm [shape: bf16[128,128], index: 2, kind: output, shape index: {0}]
  %s3 = inlined_call_operand.hbm [shape: f32[16,128], index: 3, kind: output, shape index: {1}]
  %4 = xla_tuple %s2, %s3
  %s5 = sld [smem:[#allocation0]]
  $region65: #{tpu_custom_call.1} parent=0
    _
  %s7 = ssub.s32 1, %s5
  %s8 = scalar_select 0, %s7, %s5
  $region1: #{tpu_custom_call.1} parent=0
    #allocation3 [shape = 'u8[65536]{0}', space=vmem, size = 0x10000, scoped, tag = 'input window, operand 0']
    #allocation4 [shape = 's32[2]{0}', space=sflag, size = 0x8, scoped, tag = 'scoped memory for tpu_custom_call.1']
    #allocation5 [shape = 's32[2]{0}', space=sflag, size = 0x8, scoped, tag = 'scoped memory for tpu_custom_call.1']
    #allocation6 [shape = 'u8[65536]{0}', space=vmem, size = 0x10000, scoped, tag = 'input window, operand 1, single buffered']
    #allocation7 [shape = 's32[1]{0}', space=sflag, size = 0x4, scoped, tag = 'scoped memory for tpu_custom_call.1']
    #allocation8 [shape = 'u8[32768]{0}', space=vmem, size = 0x8000, scoped, tag = 'output window, operand 0']
    #allocation9 [shape = 'u8[8192]{0}', space=vmem, size = 0x2000, scoped, tag = 'output window, operand 1']
    #allocation10 [shape = 's32[2]{0}', space=sflag, size = 0x8, scoped, tag = 'scoped memory for tpu_custom_call.1']
    %9 = vsyncpa [#allocation4], 0
    %s10 = scalar_lea.sflag [#allocation4], 1
    %11 = vsyncpa %s10, 0
    %12 = vsyncpa [#allocation7], 0
    %13 = vsyncpa [#allocation5], 0
    %s14 = scalar_lea.sflag [#allocation5], 1
    %15 = vsyncpa %s14, 0
    %16 = vsyncpa [#allocation10], 0
    %s17 = scalar_lea.sflag [#allocation10], 1
    %18 = vsyncpa %s17, 0
    loop: start=0, step=1, limit=4
    $region2: #{tpu_custom_call.1} parent=1 // loop_pre_header
      _
    $region3: #{tpu_custom_call.1} parent=1 // loop_header
      %s20 = sphi 0, %s24
      %p21 = scmp.ge.s32.totalorder %s20, 4
      %s27 = sphi 0, %s39
      %s28 = sphi 0, %s35
      %s29 = sphi 0, %s27
      %s30 = sphi 0, %s28
      %s31 = sphi 0, %s29
      %s32 = sphi 0, %s30
      %s44 = sphi 0, %s46
      %s47 = sphi 0, %s44
      %s48 = sphi 0, %s47
      %s64 = sphi 0, %s48
      %s68 = sphi 0, %s68
      %s70 = sphi 0, %s68
      %s71 = sphi 0, %s70
      %s85 = sphi 0, %s71
      %s91 = sphi 0, %s93
      %s94 = sphi 0, %s91
      %s95 = sphi 0, %s94
      %s111 = sphi 0, %s95
      %s117 = sphi 0, %s119
      %s120 = sphi 0, %s117
      %s121 = sphi 0, %s120
      %s137 = sphi 0, %s121
    $region4: #{tpu_custom_call.1} parent=1 // loop_header_branch
      %23 = sbr.rel (%p21) target = $region8
    $region5: #{tpu_custom_call.1} parent=1 // loop_body
      %s25 = ssub.s32 %s20, 1
      %s26 = ssub.s32 %s20, 2
      %s33 = sadd.s32 1, %s28
      %p34 = scmp.ge.s32.totalorder %s33, 1
      %s35 = scalar_select %p34, 0, %s33
      %s36 = sadd.s32 1, %s27
      %s37 = scalar_select %p34, %s36, %s27
      %p38 = scmp.ge.s32.totalorder %s37, 2
      %s39 = scalar_select %p38, 0, %s37
      %s40 = ssub.s32 %s27, %s39
      %s41 = ssub.s32 %s28, %s35
      %s42 = sor.u32 %s40, %s41
      %p43 = scmp.eq.s32.totalorder %s42, 0
      %s45 = sadd.s32 %s44, 1
      %s46 = scalar_select %p43, %s44, %s45
      %p49 = pneg %p43
      %p50 = scmp.eq.s32.totalorder %s20, 1
      %p51 = por %p49, %p50
      %p52 = scmp.ne.s32.totalorder %s44, %s47
      %p53 = scmp.eq.s32.totalorder %s20, 0
      %p54 = por %p52, %p53
      %p55 = scmp.ne.s32.totalorder %s44, %s47
      %p56 = scmp.eq.s32.totalorder %s25, 1
      %p57 = por %p55, %p56
      %p58 = scmp.ne.s32.totalorder %s47, %s48
      %p59 = scmp.eq.s32.totalorder %s25, 0
      %p60 = por %p58, %p59
      %p61 = scmp.ne.s32.totalorder %s47, %s48
      %p62 = scmp.eq.s32.totalorder %s26, 1
      %p63 = por %p61, %p62
      %p65 = scmp.ne.s32.totalorder %s48, %s64
      %p66 = scmp.eq.s32.totalorder %s26, 0
      %p67 = por %p65, %p66
      %s69 = sadd.s32 %s68, 1
      %p72 = scmp.eq.s32.totalorder %s20, 1
      %p73 = scmp.ne.s32.totalorder %s68, %s70
      %p74 = scmp.eq.s32.totalorder %s20, 0
      %p75 = por %p73, %p74
      %p76 = scmp.ne.s32.totalorder %s68, %s70
      %p77 = scmp.eq.s32.totalorder %s25, 1
      %p78 = por %p76, %p77
      %p79 = scmp.ne.s32.totalorder %s70, %s71
      %p80 = scmp.eq.s32.totalorder %s25, 0
      %p81 = por %p79, %p80
      %p82 = scmp.ne.s32.totalorder %s70, %s71
      %p83 = scmp.eq.s32.totalorder %s26, 1
      %p84 = por %p82, %p83
      %p86 = scmp.ne.s32.totalorder %s71, %s85
      %p87 = scmp.eq.s32.totalorder %s26, 0
      %p88 = por %p86, %p87
      %s89 = ssub.s32 %s27, %s39
      %p90 = scmp.eq.s32.totalorder %s89, 0
      %s92 = sadd.s32 %s91, 1
      %s93 = scalar_select %p90, %s91, %s92
      %p96 = pneg %p90
      %p97 = scmp.eq.s32.totalorder %s20, 1
      %p98 = por %p96, %p97
      %p99 = scmp.ne.s32.totalorder %s91, %s94
      %p100 = scmp.eq.s32.totalorder %s20, 0
      %p101 = por %p99, %p100
      %p102 = scmp.ne.s32.totalorder %s91, %s94
      %p103 = scmp.eq.s32.totalorder %s25, 1
      %p104 = por %p102, %p103
      %p105 = scmp.ne.s32.totalorder %s94, %s95
      %p106 = scmp.eq.s32.totalorder %s25, 0
      %p107 = por %p105, %p106
      %p108 = scmp.ne.s32.totalorder %s94, %s95
      %p109 = scmp.eq.s32.totalorder %s26, 1
      %p110 = por %p108, %p109
      %p112 = scmp.ne.s32.totalorder %s95, %s111
      %p113 = scmp.eq.s32.totalorder %s26, 0
      %p114 = por %p112, %p113
      %s115 = ssub.s32 %s27, %s39
      %p116 = scmp.eq.s32.totalorder %s115, 0
      %s118 = sadd.s32 %s117, 1
      %s119 = scalar_select %p116, %s117, %s118
      %p122 = pneg %p116
      %p123 = scmp.eq.s32.totalorder %s20, 1
      %p124 = por %p122, %p123
      %p125 = scmp.ne.s32.totalorder %s117, %s120
      %p126 = scmp.eq.s32.totalorder %s20, 0
      %p127 = por %p125, %p126
      %p128 = scmp.ne.s32.totalorder %s117, %s120
      %p129 = scmp.eq.s32.totalorder %s25, 1
      %p130 = por %p128, %p129
      %p131 = scmp.ne.s32.totalorder %s120, %s121
      %p132 = scmp.eq.s32.totalorder %s25, 0
      %p133 = por %p131, %p132
      %p134 = scmp.ne.s32.totalorder %s120, %s121
      %p135 = scmp.eq.s32.totalorder %s26, 1
      %p136 = por %p134, %p135
      %p138 = scmp.ne.s32.totalorder %s121, %s137
      %p139 = scmp.eq.s32.totalorder %s26, 0
      %p140 = por %p138, %p139
      %p141 = scmp.le.s32.totalorder 1, %s20
      %p142 = scmp.lt.s32.totalorder %s20, 3
      %p143 = pnand %p141, %p142
      %p144 = pneg %p143
      // Predicated region
      $region9: #{tpu_custom_call.1} parent=5 // pred_check
        _
      $region10: #{tpu_custom_call.1} parent=5 // pred_check_branch
        %146 = sbr.rel (%p143) target = $region12
      $region11: #{tpu_custom_call.1} parent=5 // pred_region
        %s147 = ssub.s32 %s20, 1
        // Predicated region
        $region13: #{tpu_custom_call.1} parent=11 // pred_check
          %p148 = pneg %p81
        $region14: #{tpu_custom_call.1} parent=11 // pred_check_branch
          %150 = sbr.rel (%p148) target = $region16
        $region15: #{tpu_custom_call.1} parent=11 // pred_region
          %s152 = ssub.s32 2048, 2048
          %153 = vsyncadd [#allocation7], %s152
          %s154 = sshll.u32 [#allocation6], 4
          %s155 = int_to_ptr.vmem [resolvable:$true] %s154
          %160 = dma.hbm_to_vmem [thread:$0]  %s1, 2048, %s155, [#allocation7], 64, 64, 4
        $region16: #{tpu_custom_call.1} parent=11 // pred_fallthru
          _
      $region12: #{tpu_custom_call.1} parent=5 // pred_fallthru
        _
      %p161 = scmp.lt.s32.totalorder %s20, 2
      // Predicated region
      $region17: #{tpu_custom_call.1} parent=5 // pred_check
        %p162 = pneg %p161
      $region18: #{tpu_custom_call.1} parent=5 // pred_check_branch
        %164 = sbr.rel (%p162) target = $region20
      $region19: #{tpu_custom_call.1} parent=5 // pred_region
        // Predicated region
        $region21: #{tpu_custom_call.1} parent=19 // pred_check
          %p165 = pneg %p54
        $region22: #{tpu_custom_call.1} parent=19 // pred_check_branch
          %167 = sbr.rel (%p165) target = $region24
        $region23: #{tpu_custom_call.1} parent=19 // pred_region
          %s168 = sand.u32 %s44, 1
          %s169 = scalar_lea.sflag [#allocation4], %s168
          %s170 = sand.u32 %s44, 1
          %s171 = smul.addr %s170, 64
          %s172 = scalar_lea.vmem [#allocation3], %s171
          %s173 = smul.u32 8, %s27
          %s174 = smul.u32 2, %s28
          %s176 = ssub.s32 1024, 1024
          %177 = vsyncadd %s169, %s176
          %s178 = smul.addr %s173, 2
          %s179 = sadd.s32 %s174, %s178
          %s180 = smul.addr %s179, 64
          %s181 = scalar_lea.hbm %s0, %s180
          %s182 = sshll.u32 %s172, 4
          %s183 = int_to_ptr.vmem [resolvable:$true] %s182
          %188 = dma.hbm_to_vmem [thread:$0]  %s181, 1024, %s183, %s169, 128, 128, 8
        $region24: #{tpu_custom_call.1} parent=19 // pred_fallthru
          _
      $region20: #{tpu_custom_call.1} parent=5 // pred_fallthru
        _
      %p189 = scmp.le.s32.totalorder 1, %s20
      %p190 = scmp.lt.s32.totalorder %s20, 3
      %p191 = pnand %p189, %p190
      %p192 = pneg %p191
      // Predicated region
      $region25: #{tpu_custom_call.1} parent=5 // pred_check
        _
      $region26: #{tpu_custom_call.1} parent=5 // pred_check_branch
        %194 = sbr.rel (%p191) target = $region28
      $region27: #{tpu_custom_call.1} parent=5 // pred_region
        %s195 = ssub.s32 %s20, 1
        %s196 = sand.u32 %s47, 1
        %s197 = scalar_lea.sflag [#allocation4], %s196
        %s198 = sand.u32 %s47, 1
        %s199 = smul.addr %s198, 64
        %s200 = scalar_lea.vmem [#allocation3], %s199
        // Predicated region
        $region29: #{tpu_custom_call.1} parent=27 // pred_check
          %p201 = pneg %p60
        $region30: #{tpu_custom_call.1} parent=27 // pred_check_branch
          %203 = sbr.rel (%p201) target = $region32
        $region31: #{tpu_custom_call.1} parent=27 // pred_region
          %204 = dma.done %s197, 1024
        $region32: #{tpu_custom_call.1} parent=27 // pred_fallthru
          _
        // Predicated region
        $region33: #{tpu_custom_call.1} parent=27 // pred_check
          %p205 = pneg %p81
        $region34: #{tpu_custom_call.1} parent=27 // pred_check_branch
          %207 = sbr.rel (%p205) target = $region36
        $region35: #{tpu_custom_call.1} parent=27 // pred_region
          %208 = dma.done [#allocation7], 2048
        $region36: #{tpu_custom_call.1} parent=27 // pred_fallthru
          _
        %s209 = sand.u32 %s47, 1
        %s210 = scalar_lea.sflag [#allocation4], %s209
        %s211 = sand.u32 %s47, 1
        %s212 = smul.addr %s211, 64
        %s213 = scalar_lea.vmem [#allocation3], %s212
        %p214 = pneg %p60
        %p215 = pneg %p57
        %p216 = pneg %p81
        %p217 = pneg %p78
        %p218 = pneg %p107
        %p219 = pneg %p104
        %s220 = sand.u32 %s94, 1
        %s221 = scalar_lea.sflag [#allocation5], %s220
        %s222 = sand.u32 %s94, 1
        %s223 = smul.addr %s222, 32
        %s224 = scalar_lea.vmem [#allocation8], %s223
        %p225 = pneg %p133
        %p226 = pneg %p130
        %s227 = sand.u32 %s120, 1
        %s228 = scalar_lea.sflag [#allocation10], %s227
        %s229 = sand.u32 %s120, 1
        %s230 = smul.addr %s229, 8
        %s231 = scalar_lea.vmem [#allocation9], %s230
        %s232 = smul.u32 8, %s29
        %s233 = smul.u32 2, %s30
        %s234 = smul.u32 8, %s29
        %p236 = scmp.eq.s32.totalorder %s30, 0
        // Predicated region
        $region37: #{tpu_custom_call.1} parent=27 // pred_check
          %p237 = pneg %p236
        $region38: #{tpu_custom_call.1} parent=27 // pred_check_branch
          %239 = sbr.rel (%p237) target = $region40
        $region39: #{tpu_custom_call.1} parent=27 // pred_region
          %240 = vst [vmem:[#allocation2] sm:$0xff] 0.0
          %241 = vst [vmem:[#allocation2 + $0x8] sm:$0xff] 0.0
          %242 = vst [vmem:[#allocation2 + $0x10] sm:$0xff] 0.0
          %243 = vst [vmem:[#allocation2 + $0x18] sm:$0xff] 0.0
          %244 = vst [vmem:[#allocation2 + $0x20] sm:$0xff] 0.0
          %245 = vst [vmem:[#allocation2 + $0x28] sm:$0xff] 0.0
          %246 = vst [vmem:[#allocation2 + $0x30] sm:$0xff] 0.0
          %247 = vst [vmem:[#allocation2 + $0x38] sm:$0xff] 0.0
        $region40: #{tpu_custom_call.1} parent=27 // pred_fallthru
          _
        %v248 = vld [vmem:[#allocation2] sm:$0xff]
        %v249 = vld [vmem:[#allocation2 + $0x8] sm:$0xff]
        %v250 = vld [vmem:[#allocation2 + $0x10] sm:$0xff]
        %v251 = vld [vmem:[#allocation2 + $0x18] sm:$0xff]
        %v252 = vld [vmem:[#allocation2 + $0x20] sm:$0xff]
        %v253 = vld [vmem:[#allocation2 + $0x28] sm:$0xff]
        %v254 = vld [vmem:[#allocation2 + $0x30] sm:$0xff]
        %v255 = vld [vmem:[#allocation2 + $0x38] sm:$0xff]
        %v256 = vld [vmem:[%s200] sm:$0xff]
        %v257 = vld [vmem:[%s200 + $0x8] sm:$0xff]
        %v258 = vld [vmem:[%s200 + $0x10] sm:$0xff]
        %v259 = vld [vmem:[%s200 + $0x18] sm:$0xff]
        %v260 = vld [vmem:[%s200 + $0x20] sm:$0xff]
        %v261 = vld [vmem:[%s200 + $0x28] sm:$0xff]
        %v262 = vld [vmem:[%s200 + $0x30] sm:$0xff]
        %v263 = vld [vmem:[%s200 + $0x38] sm:$0xff]
        %s264 = smul.u32 %s30, 32
        %s265 = smul.addr %s264, 4
        %s266 = scalar_lea.vmem [#allocation6], %s265
        %v267 = vld [vmem:[%s266] sm:$0xf]
        %v268 = vld [vmem:[%s266 + $0x4] sm:$0xf]
        %v269 = vld [vmem:[%s266 + $0x8] sm:$0xf]
        %v270 = vld [vmem:[%s266 + $0xc] sm:$0xf]
        %v271 = vld [vmem:[%s266 + $0x10] sm:$0xf]
        %v272 = vld [vmem:[%s266 + $0x14] sm:$0xf]
        %v273 = vld [vmem:[%s266 + $0x18] sm:$0xf]
        %v274 = vld [vmem:[%s266 + $0x1c] sm:$0xf]
        %v275 = vld [vmem:[%s266 + $0x20] sm:$0xf]
        %v276 = vld [vmem:[%s266 + $0x24] sm:$0xf]
        %v277 = vld [vmem:[%s266 + $0x28] sm:$0xf]
        %v278 = vld [vmem:[%s266 + $0x2c] sm:$0xf]
        %v279 = vld [vmem:[%s266 + $0x30] sm:$0xf]
        %v280 = vld [vmem:[%s266 + $0x34] sm:$0xf]
        %v281 = vld [vmem:[%s266 + $0x38] sm:$0xf]
        %v282 = vld [vmem:[%s266 + $0x3c] sm:$0xf]
        %v283 = vld [vmem:[%s266 + $0x40] sm:$0xf]
        %v284 = vld [vmem:[%s266 + $0x44] sm:$0xf]
        %v285 = vld [vmem:[%s266 + $0x48] sm:$0xf]
        %v286 = vld [vmem:[%s266 + $0x4c] sm:$0xf]
        %v287 = vld [vmem:[%s266 + $0x50] sm:$0xf]
        %v288 = vld [vmem:[%s266 + $0x54] sm:$0xf]
        %v289 = vld [vmem:[%s266 + $0x58] sm:$0xf]
        %v290 = vld [vmem:[%s266 + $0x5c] sm:$0xf]
        %v291 = vld [vmem:[%s266 + $0x60] sm:$0xf]
        %v292 = vld [vmem:[%s266 + $0x64] sm:$0xf]
        %v293 = vld [vmem:[%s266 + $0x68] sm:$0xf]
        %v294 = vld [vmem:[%s266 + $0x6c] sm:$0xf]
        %v295 = vld [vmem:[%s266 + $0x70] sm:$0xf]
        %v296 = vld [vmem:[%s266 + $0x74] sm:$0xf]
        %v297 = vld [vmem:[%s266 + $0x78] sm:$0xf]
        %v298 = vld [vmem:[%s266 + $0x7c] sm:$0xf]
        %v307 = vunpack.c.l.b16 %v256
        %v308 = vunpack.c.h.b16 %v256
        %v309 = vunpack.c.l.b16 %v257
        %v310 = vunpack.c.h.b16 %v257
        %v311 = vunpack.c.l.b16 %v258
        %v312 = vunpack.c.h.b16 %v258
        %v313 = vunpack.c.l.b16 %v259
        %v314 = vunpack.c.h.b16 %v259
        %v315 = vunpack.c.l.b16 %v260
        %v316 = vunpack.c.h.b16 %v260
        %v317 = vunpack.c.l.b16 %v261
        %v318 = vunpack.c.h.b16 %v261
        %v319 = vunpack.c.l.b16 %v262
        %v320 = vunpack.c.h.b16 %v262
        %v321 = vunpack.c.l.b16 %v263
        %v322 = vunpack.c.h.b16 %v263
        %v323 = vpack.c.b16 %v309, %v307
        %v324 = vpack.c.b16 %v310, %v308
        %v325 = vpack.c.b16 %v313, %v311
        %v326 = vpack.c.b16 %v314, %v312
        %v327 = vpack.c.b16 %v317, %v315
        %v328 = vpack.c.b16 %v318, %v316
        %v329 = vpack.c.b16 %v321, %v319
        %v330 = vpack.c.b16 %v322, %v320
        %v371 = vunpack.c.l.b16 %v267
        %v372 = vunpack.c.l.b16 %v268
        %v373 = vunpack.c.l.b16 %v269
        %v374 = vunpack.c.l.b16 %v270
        %v375 = vunpack.c.l.b16 %v271
        %v376 = vunpack.c.l.b16 %v272
        %v377 = vunpack.c.l.b16 %v273
        %v378 = vunpack.c.l.b16 %v274
        %v379 = vunpack.c.l.b16 %v275
        %v380 = vunpack.c.l.b16 %v276
        %v381 = vunpack.c.l.b16 %v277
        %v382 = vunpack.c.l.b16 %v278
        %v383 = vunpack.c.l.b16 %v279
        %v384 = vunpack.c.l.b16 %v280
        %v385 = vunpack.c.l.b16 %v281
        %v386 = vunpack.c.l.b16 %v282
        %v387 = vunpack.c.l.b16 %v283
        %v388 = vunpack.c.l.b16 %v284
        %v389 = vunpack.c.l.b16 %v285
        %v390 = vunpack.c.l.b16 %v286
        %v391 = vunpack.c.l.b16 %v287
        %v392 = vunpack.c.l.b16 %v288
        %v393 = vunpack.c.l.b16 %v289
        %v394 = vunpack.c.l.b16 %v290
        %v395 = vunpack.c.l.b16 %v291
        %v396 = vunpack.c.l.b16 %v292
        %v397 = vunpack.c.l.b16 %v293
        %v398 = vunpack.c.l.b16 %v294
        %v399 = vunpack.c.l.b16 %v295
        %v400 = vunpack.c.l.b16 %v296
        %v401 = vunpack.c.l.b16 %v297
        %v402 = vunpack.c.l.b16 %v298
        %v403 = vpack.c.b16 %v372, %v371
        %v404 = vpack.c.b16 %v374, %v373
        %v405 = vpack.c.b16 %v376, %v375
        %v406 = vpack.c.b16 %v378, %v377
        %v407 = vpack.c.b16 %v380, %v379
        %v408 = vpack.c.b16 %v382, %v381
        %v409 = vpack.c.b16 %v384, %v383
        %v410 = vpack.c.b16 %v386, %v385
        %v411 = vpack.c.b16 %v388, %v387
        %v412 = vpack.c.b16 %v390, %v389
        %v413 = vpack.c.b16 %v392, %v391
        %v414 = vpack.c.b16 %v394, %v393
        %v415 = vpack.c.b16 %v396, %v395
        %v416 = vpack.c.b16 %v398, %v397
        %v417 = vpack.c.b16 %v400, %v399
        %v418 = vpack.c.b16 %v402, %v401
        %435 = vmatprep.subr.bf16.mxu0 0
        %436 = vmatpush1.bf16.msra.mxu0 %v410
        %437 = vmatprep.subr.bf16.mxu0 0
        %438 = vmatpush1.bf16.msra.mxu0 %v409
        %439 = vmatprep.subr.bf16.mxu0 0
        %440 = vmatpush1.bf16.msra.mxu0 %v408
        %441 = vmatprep.subr.bf16.mxu0 0
        %442 = vmatpush1.bf16.msra.mxu0 %v407
        %443 = vmatprep.subr.bf16.mxu0 0
        %444 = vmatpush1.bf16.msra.mxu0 %v406
        %445 = vmatprep.subr.bf16.mxu0 0
        %446 = vmatpush1.bf16.msra.mxu0 %v405
        %447 = vmatprep.subr.bf16.mxu0 0
        %448 = vmatpush1.bf16.msra.mxu0 %v404
        %449 = vmatprep.subr.bf16.mxu0 0
        %450 = vmatpush1.bf16.msra.mxu0 %v403
        %451 = vmatprep.subr.bf16.mxu0 0
        %452 = vmatpush2.bf16.msra.mxu0 %v418
        %453 = vmatprep.subr.bf16.mxu0 0
        %454 = vmatpush2.bf16.msra.mxu0 %v417
        %455 = vmatprep.subr.bf16.mxu0 0
        %456 = vmatpush2.bf16.msra.mxu0 %v416
        %457 = vmatprep.subr.bf16.mxu0 0
        %458 = vmatpush2.bf16.msra.mxu0 %v415
        %459 = vmatprep.subr.bf16.mxu0 0
        %460 = vmatpush2.bf16.msra.mxu0 %v414
        %461 = vmatprep.subr.bf16.mxu0 0
        %462 = vmatpush2.bf16.msra.mxu0 %v413
        %463 = vmatprep.subr.bf16.mxu0 0
        %464 = vmatpush2.bf16.msra.mxu0 %v412
        %465 = vmatprep.subr.bf16.mxu0 0
        %466 = vmatpush2.bf16.msra.mxu0 %v411
        %467 = vmatprep.mubr.bf16.mxu0 %v324
        %468 = vmatmul.mubr.bf16.gmra.mxu0 %v323
        %v469 = vpop.f32.mrf.mxu0
        %v470 = vadd.f32 0.0, %v469
        %v471 = vpop.f32.mrf.mxu0
        %v472 = vpop.f32.mrf.mxu0
        %v473 = vadd.f32 0.0, %v472
        %v474 = vpop.f32.mrf.mxu0
        %475 = vmatprep.mubr.bf16.mxu0 %v326
        %476 = vmatmul.mubr.bf16.gmra.mxu0 %v325
        %v477 = vpop.f32.mrf.mxu0
        %v478 = vadd.f32 0.0, %v477
        %v479 = vpop.f32.mrf.mxu0
        %v480 = vpop.f32.mrf.mxu0
        %v481 = vadd.f32 0.0, %v480
        %v482 = vpop.f32.mrf.mxu0
        %483 = vmatprep.mubr.bf16.mxu0 %v328
        %484 = vmatmul.mubr.bf16.gmra.mxu0 %v327
        %v485 = vpop.f32.mrf.mxu0
        %v486 = vadd.f32 0.0, %v485
        %v487 = vpop.f32.mrf.mxu0
        %v488 = vpop.f32.mrf.mxu0
        %v489 = vadd.f32 0.0, %v488
        %v490 = vpop.f32.mrf.mxu0
        %491 = vmatprep.mubr.bf16.mxu0 %v330
        %492 = vmatmul.mubr.bf16.gmra.mxu0 %v329
        %v493 = vpop.f32.mrf.mxu0
        %v494 = vadd.f32 0.0, %v493
        %v495 = vpop.f32.mrf.mxu0
        %v496 = vpop.f32.mrf.mxu0
        %v497 = vadd.f32 0.0, %v496
        %v498 = vpop.f32.mrf.mxu0
        %499 = vdwg.mxu0
        %v500 = vadd.f32 %v248, %v470
        %v501 = vadd.f32 %v249, %v473
        %v502 = vadd.f32 %v250, %v478
        %v503 = vadd.f32 %v251, %v481
        %v504 = vadd.f32 %v252, %v486
        %v505 = vadd.f32 %v253, %v489
        %v506 = vadd.f32 %v254, %v494
        %v507 = vadd.f32 %v255, %v497
        %508 = vst [vmem:[#allocation2] sm:$0xff] %v500
        %509 = vst [vmem:[#allocation2 + $0x8] sm:$0xff] %v501
        %510 = vst [vmem:[#allocation2 + $0x10] sm:$0xff] %v502
        %511 = vst [vmem:[#allocation2 + $0x18] sm:$0xff] %v503
        %512 = vst [vmem:[#allocation2 + $0x20] sm:$0xff] %v504
        %513 = vst [vmem:[#allocation2 + $0x28] sm:$0xff] %v505
        %514 = vst [vmem:[#allocation2 + $0x30] sm:$0xff] %v506
        %515 = vst [vmem:[#allocation2 + $0x38] sm:$0xff] %v507
        // Predicated region
        $region41: #{tpu_custom_call.1} parent=27 // pred_check
          %p516 = pneg %p236
        $region42: #{tpu_custom_call.1} parent=27 // pred_check_branch
          %518 = sbr.rel (%p516) target = $region44
        $region43: #{tpu_custom_call.1} parent=27 // pred_region
          %v519 = vld [vmem:[#allocation2] sm:$0xff]
          %v520 = vld [vmem:[#allocation2 + $0x8] sm:$0xff]
          %v521 = vld [vmem:[#allocation2 + $0x10] sm:$0xff]
          %v522 = vld [vmem:[#allocation2 + $0x18] sm:$0xff]
          %v523 = vld [vmem:[#allocation2 + $0x20] sm:$0xff]
          %v524 = vld [vmem:[#allocation2 + $0x28] sm:$0xff]
          %v525 = vld [vmem:[#allocation2 + $0x30] sm:$0xff]
          %v526 = vld [vmem:[#allocation2 + $0x38] sm:$0xff]
          %v527 = vpack.c.bf16 %v520, %v519
          %v528 = vpack.c.bf16 %v522, %v521
          %v529 = vpack.c.bf16 %v524, %v523
          %v530 = vpack.c.bf16 %v526, %v525
          %v535 = vunpack.c.l.b16 %v527
          %v536 = vunpack.c.h.b16 %v527
          %v537 = vunpack.c.l.b16 %v528
          %v538 = vunpack.c.h.b16 %v528
          %v539 = vunpack.c.l.b16 %v529
          %v540 = vunpack.c.h.b16 %v529
          %v541 = vunpack.c.l.b16 %v530
          %v542 = vunpack.c.h.b16 %v530
          %v543 = vpack.c.b16 %v535, %v535
          %v544 = vpack.c.b16 %v536, %v536
          %v545 = vpack.c.b16 %v537, %v537
          %v546 = vpack.c.b16 %v538, %v538
          %v547 = vpack.c.b16 %v539, %v539
          %v548 = vpack.c.b16 %v540, %v540
          %v549 = vpack.c.b16 %v541, %v541
          %v550 = vpack.c.b16 %v542, %v542
          %559 = vst [vmem:[%s224] sm:$0xf] %v543
          %560 = vst [vmem:[%s224 + $0x4] sm:$0xf] %v544
          %561 = vst [vmem:[%s224 + $0x8] sm:$0xf] %v545
          %562 = vst [vmem:[%s224 + $0xc] sm:$0xf] %v546
          %563 = vst [vmem:[%s224 + $0x10] sm:$0xf] %v547
          %564 = vst [vmem:[%s224 + $0x14] sm:$0xf] %v548
          %565 = vst [vmem:[%s224 + $0x18] sm:$0xf] %v549
          %566 = vst [vmem:[%s224 + $0x1c] sm:$0xf] %v550
          %v567 = vadd.f32 %v519, %v520
          %v568 = vadd.f32 %v567, %v521
          %v569 = vadd.f32 %v568, %v522
          %v570 = vadd.f32 %v569, %v523
          %v571 = vadd.f32 %v570, %v524
          %v572 = vadd.f32 %v571, %v525
          %v573 = vadd.f32 %v572, %v526
          %v574 = vrot.slane %v573, 4
          %v575 = vadd.f32 %v573, %v574
          %v576 = vrot.slane %v575, 2
          %v577 = vadd.f32 %v575, %v576
          %v578 = vrot.slane %v577, 1
          %v579 = vadd.f32 %v577, %v578
          %v580 = vmul.f32 %v519, %v519
          %v581 = vmul.f32 %v520, %v520
          %v582 = vmul.f32 %v521, %v521
          %v583 = vmul.f32 %v522, %v522
          %v584 = vmul.f32 %v523, %v523
          %v585 = vmul.f32 %v524, %v524
          %v586 = vmul.f32 %v525, %v525
          %v587 = vmul.f32 %v526, %v526
          %v588 = vadd.f32 %v580, %v581
          %v589 = vadd.f32 %v588, %v582
          %v590 = vadd.f32 %v589, %v583
          %v591 = vadd.f32 %v590, %v584
          %v592 = vadd.f32 %v591, %v585
          %v593 = vadd.f32 %v592, %v586
          %v594 = vadd.f32 %v593, %v587
          %v595 = vrot.slane %v594, 4
          %v596 = vadd.f32 %v594, %v595
          %v597 = vrot.slane %v596, 2
          %v598 = vadd.f32 %v596, %v597
          %v599 = vrot.slane %v598, 1
          %v600 = vadd.f32 %v598, %v599
          %vm601 = vcmask 1040384
          %v602 = vsel %vm601, %v579, %v600
          %vm603 = vcmask 1041408
          %v604 = vsel %vm603, %v602, 0.0
          %605 = vst [vmem:[%s231] sm:$0xff] %v604
        $region44: #{tpu_custom_call.1} parent=27 // pred_fallthru
          _
        %s606 = sand.u32 %s94, 1
        %s607 = scalar_lea.sflag [#allocation5], %s606
        %s608 = sand.u32 %s94, 1
        %s609 = smul.addr %s608, 32
        %s610 = scalar_lea.vmem [#allocation8], %s609
        %s611 = sand.u32 %s120, 1
        %s612 = scalar_lea.sflag [#allocation10], %s611
        %s613 = sand.u32 %s120, 1
        %s614 = smul.addr %s613, 8
        %s615 = scalar_lea.vmem [#allocation9], %s614
        // Predicated region
        $region45: #{tpu_custom_call.1} parent=27 // pred_check
          %p616 = pneg %p104
        $region46: #{tpu_custom_call.1} parent=27 // pred_check_branch
          %618 = sbr.rel (%p616) target = $region48
        $region47: #{tpu_custom_call.1} parent=27 // pred_region
          %s619 = smul.u32 8, %s29
          %s621 = ssub.s32 512, 512
          %622 = vsyncadd %s607, %s621
          %s623 = smul.addr %s619, 64
          %s624 = scalar_lea.hbm %s2, %s623
          %s625 = sshll.u32 %s610, 4
          %s626 = int_to_ptr.vmem [resolvable:$true] %s625
          %631 = dma.vmem_to_hbm [thread:$0]  %s626, 512, %s624, %s607, 64, 64, 4
        $region48: #{tpu_custom_call.1} parent=27 // pred_fallthru
          _
        // Predicated region
        $region49: #{tpu_custom_call.1} parent=27 // pred_check
          %p632 = pneg %p130
        $region50: #{tpu_custom_call.1} parent=27 // pred_check_branch
          %634 = sbr.rel (%p632) target = $region52
        $region51: #{tpu_custom_call.1} parent=27 // pred_region
          %s636 = ssub.s32 128, 128
          %637 = vsyncadd %s612, %s636
          %s638 = smul.addr %s29, 128
          %s639 = scalar_lea.hbm %s3, %s638
          %s641 = sshll.u32 %s615, 4
          %s642 = int_to_ptr.vmem [resolvable:$true] %s641
          %644 = dma.vmem_to_hbm [thread:$0]  %s642, 128, %s639, %s612
        $region52: #{tpu_custom_call.1} parent=27 // pred_fallthru
          _
      $region28: #{tpu_custom_call.1} parent=5 // pred_fallthru
        _
      %p645 = scmp.le.s32.totalorder 2, %s20
      // Predicated region
      $region53: #{tpu_custom_call.1} parent=5 // pred_check
        %p646 = pneg %p645
      $region54: #{tpu_custom_call.1} parent=5 // pred_check_branch
        %648 = sbr.rel (%p646) target = $region56
      $region55: #{tpu_custom_call.1} parent=5 // pred_region
        %s649 = ssub.s32 %s20, 2
        // Predicated region
        $region57: #{tpu_custom_call.1} parent=55 // pred_check
          %p650 = pneg %p110
        $region58: #{tpu_custom_call.1} parent=55 // pred_check_branch
          %652 = sbr.rel (%p650) target = $region60
        $region59: #{tpu_custom_call.1} parent=55 // pred_region
          %s653 = sand.u32 %s95, 1
          %s654 = scalar_lea.sflag [#allocation5], %s653
          %s655 = sand.u32 %s95, 1
          %s656 = smul.addr %s655, 32
          %s657 = scalar_lea.vmem [#allocation8], %s656
          %658 = dma.done %s654, 512
        $region60: #{tpu_custom_call.1} parent=55 // pred_fallthru
          _
        // Predicated region
        $region61: #{tpu_custom_call.1} parent=55 // pred_check
          %p659 = pneg %p136
        $region62: #{tpu_custom_call.1} parent=55 // pred_check_branch
          %661 = sbr.rel (%p659) target = $region64
        $region63: #{tpu_custom_call.1} parent=55 // pred_region
          %s662 = sand.u32 %s121, 1
          %s663 = scalar_lea.sflag [#allocation10], %s662
          %s664 = sand.u32 %s121, 1
          %s665 = smul.addr %s664, 8
          %s666 = scalar_lea.vmem [#allocation9], %s665
          %667 = dma.done %s663, 128
        $region64: #{tpu_custom_call.1} parent=55 // pred_fallthru
          _
      $region56: #{tpu_custom_call.1} parent=5 // pred_fallthru
        _
    $region6: #{tpu_custom_call.1} parent=1 // loop_footer
      %s24 = sadd.s32 1, %s20
    $region7: #{tpu_custom_call.1} parent=1 // loop_footer_branch
      %19 = sbr.rel target = $region3
    $region8: #{tpu_custom_call.1} parent=1 // loop_exit
      _
    %668 = vsyncpa [#allocation4], 1
    %s669 = scalar_lea.sflag [#allocation4], 1
    %670 = vsyncpa %s669, 1
    %671 = vsyncpa [#allocation7], 1
    %672 = vsyncpa [#allocation5], 1
    %s673 = scalar_lea.sflag [#allocation5], 1
    %674 = vsyncpa %s673, 1
    %675 = vsyncpa [#allocation10], 1
    %s676 = scalar_lea.sflag [#allocation10], 1
    %677 = vsyncpa %s676, 1

</llo_original>
